<compile_context>
chip_gen: v7x
topology: tpu7x:2x2x1
jax: 0.10.0
libtpu: 0.0.40
codegen_flags: <defaults>
</compile_context>

<pallas_src>
import functools
from itertools import combinations

import numpy as np
import jax
import jax.numpy as jnp
from jax import lax
from jax.experimental import pallas as pl
from jax.experimental.pallas import tpu as pltpu

MARGIN = 1.0          # triplet_selector.margin
EPS = 1e-6            # F.pairwise_distance default eps (added elementwise)
LANES = 128
DIST_TILE = 128       # row/col tile of the N x N distance matrix
REDUCE_ROWS = 1024    # max sublane rows per reduction grid step (x128 lanes)


def _round_up(x, m):
    return ((x + m - 1) // m) * m


# --------------------- kernel 1: pairwise distance (MXU) ------------------- #
def pairwise_dist_kernel(fi_ref, fj_ref, sqj_ref, sj_ref, dist_ref, *,
                         eps, d_real):
    fi = fi_ref[...]                                            # (TI, Dp)
    fj = fj_ref[...]                                            # (TJ, Dp)
    # G[i, j] = f_i . f_j   (contract last dims; MXU)
    g = lax.dot_general(fi, fj, (((1,), (1,)), ((), ())),
                        preferred_element_type=jnp.float32)     # (TI, TJ)
    sqi = jnp.sum(fi * fi, axis=-1, keepdims=True)              # (TI, 1)
    si = jnp.sum(fi, axis=-1, keepdims=True)                    # (TI, 1)

    # ||f_i - f_j + eps||^2 = sq_i + sq_j - 2 G + 2 eps (s_i - s_j) + D eps^2
    d2 = (-2.0) * g
    d2 = d2 + sqi                      # lane broadcast
    d2 = d2 + sqj_ref[...]             # sublane broadcast of (1, TJ)
    d2 = d2 + (2.0 * eps) * si
    d2 = d2 - (2.0 * eps) * sj_ref[...]
    d2 = d2 + (d_real * eps * eps)
    dist_ref[...] = jnp.sqrt(jnp.maximum(d2, 0.0))


def pairwise_distance_matrix(features, *, eps=EPS):
    """Exact eps-corrected L2 distance matrix, padded to (Np, Np)."""
    N, D = features.shape
    TI = DIST_TILE
    Np = _round_up(N, TI)
    Dp = _round_up(D, LANES)
    f = jnp.pad(features.astype(jnp.float32), ((0, Np - N), (0, Dp - D)))
    sq = jnp.sum(f * f, axis=1)[None, :]            # (1, Np)
    s = jnp.sum(f, axis=1)[None, :]                 # (1, Np)

    return pl.pallas_call(
        functools.partial(pairwise_dist_kernel, eps=eps, d_real=D),
        out_shape=jax.ShapeDtypeStruct((Np, Np), jnp.float32),
        grid=(Np // TI, Np // TI),
        in_specs=[
            pl.BlockSpec((TI, Dp), lambda i, j: (i, 0)),    # rows (anchor side)
            pl.BlockSpec((TI, Dp), lambda i, j: (j, 0)),    # cols (other side)
            pl.BlockSpec((1, TI), lambda i, j: (0, j)),     # ||f_j||^2 row
            pl.BlockSpec((1, TI), lambda i, j: (0, j)),     # sum(f_j) row
        ],
        out_specs=pl.BlockSpec((TI, TI), lambda i, j: (i, j)),
        compiler_params=pltpu.CompilerParams(
            dimension_semantics=("parallel", "parallel")),
    )(f, f, sq, s)


# ----------------- kernel 2: lane-dense triplet reduction ------------------ #
def triplet_reduce_kernel(dap_ref, dan_ref, w_ref, o_ref, acc_ref, *, margin):
    @pl.when(pl.program_id(0) == 0)
    def _init():
        acc_ref[...] = jnp.zeros_like(acc_ref)

    losses = jnp.maximum(dap_ref[...] - dan_ref[...] + margin, 0.0)
    acc_ref[...] += jnp.sum(losses * w_ref[...])

    @pl.when(pl.program_id(0) == pl.num_programs(0) - 1)
    def _fin():
        o_ref[...] = acc_ref[...]


def triplet_reduce(d_ap, d_an, wgm, *, margin):
    T = d_ap.shape[0]
    rows = _round_up(T, LANES) // LANES
    TR = min(REDUCE_ROWS, _round_up(rows, 8))       # sublane tile (mult. of 8)
    Rp = _round_up(rows, TR)
    Tp = Rp * LANES

    def prep(x):
        # pad with zeros (padded wgm == 0 => zero contribution), lane-dense 2D
        return jnp.pad(x.astype(jnp.float32), (0, Tp - T)).reshape(Rp, LANES)

    spec = pl.BlockSpec((TR, LANES), lambda i: (i, 0))
    out = pl.pallas_call(
        functools.partial(triplet_reduce_kernel, margin=margin),
        out_shape=jax.ShapeDtypeStruct((1, 1), jnp.float32),
        grid=(Rp // TR,),
        in_specs=[spec, spec, spec],
        out_specs=pl.BlockSpec((1, 1), lambda i: (0, 0)),
        scratch_shapes=[pltpu.VMEM((1, 1), jnp.float32)],
        compiler_params=pltpu.CompilerParams(
            dimension_semantics=("arbitrary",)),
    )(prep(d_ap), prep(d_an), prep(wgm))
    return out[0, 0]


# ------------------------------- forward ----------------------------------- #
def triplet_loss_pallas(features, triplets, weights, *, margin=MARGIN,
                        average=False, n_batch=None):
    """TripletLoss.forward hot path for a given triplet set."""
    dist = pairwise_distance_matrix(features)            # (Np, Np), MXU kernel

    ta = triplets[:, 0]
    tp_ = triplets[:, 1]
    tn = triplets[:, 2]
    # O(T) scalar gathers (glue) instead of O(T*D) row gathers.
    d_ap = dist[ta, tp_]
    d_an = dist[ta, tn]

    w = weights.astype(jnp.float32)
    # weights[triplets].prod(dim=1).pow(1/3) precomputed once (no per-step EUP)
    wgm = jnp.power(w[ta] * w[tp_] * w[tn], 1.0 / 3.0)

    total = triplet_reduce(d_ap, d_an, wgm, margin=margin)
    if average:
        total = total / jnp.float32(n_batch)
    return total


def all_triplets(labels_np):
    """Deterministic AllTripletSelector: every (anchor, positive, negative)."""
    labels_np = np.asarray(labels_np)
    trips = []
    for lbl in np.unique(labels_np):
        pos = np.where(labels_np == lbl)[0]
        neg = np.where(labels_np != lbl)[0]
        if len(pos) < 2 or len(neg) == 0:
            continue
        for a, p in combinations(pos, 2):
            for n in neg:
                trips.append((a, p, n))
    if not trips:
        return None
    return np.asarray(trips, dtype=np.int32)


def triplet_loss_forward(features, labels, weights, *, margin=MARGIN,
                         average=False):
    """Mirrors TripletLoss.forward with a deterministic AllTripletSelector."""
    n_batch = features.shape[0]
    triplets = all_triplets(labels)
    if triplets is None:
        return jnp.float32(0.0)
    return triplet_loss_pallas(features, jnp.asarray(triplets),
                               jnp.asarray(weights, dtype=jnp.float32),
                               margin=margin, average=average,
                               n_batch=n_batch)


# --------------------------- pure-JAX reference ---------------------------- #
def triplet_loss_reference(features, triplets, weights, margin=MARGIN):
    fa = features[triplets[:, 0]]
    fp = features[triplets[:, 1]]
    fn = features[triplets[:, 2]]
    ap = jnp.sqrt(jnp.sum((fa - fp + EPS) ** 2, axis=-1))
    an = jnp.sqrt(jnp.sum((fa - fn + EPS) ** 2, axis=-1))
    losses = jnp.maximum(ap - an + margin, 0.0)
    w = jnp.prod(weights[triplets], axis=1) ** (1.0 / 3.0)
    return jnp.sum(losses * w)


if __name__ == "__main__":
    key = jax.random.PRNGKey(0)
    kf, kw = jax.random.split(key)

    # Small deterministic batch: 20 samples, hidden dim 32, 4 classes.
    batch, D = 20, 32
    features = jax.random.normal(kf, (batch, D), dtype=jnp.float32)
    labels = np.arange(batch) % 4
    weights = jax.random.uniform(kw, (batch,), dtype=jnp.float32,
                                 minval=0.5, maxval=1.5)

    loss = triplet_loss_forward(features, labels, weights,
                                margin=MARGIN, average=False)
    loss = jax.block_until_ready(loss)

    triplets = all_triplets(labels)
    ref = triplet_loss_reference(features, jnp.asarray(triplets), weights,
                                 margin=MARGIN)
    np.testing.assert_allclose(np.asarray(loss), np.asarray(ref),
                               rtol=1e-3, atol=1e-3)

    print("KERNEL_OK")
</pallas_src>

<mosaic_0001>
module attributes {stable_mosaic.version = 11 : i64} {
  func.func @pairwise_dist_kernel(%arg0: i32, %arg1: i32, %arg2: memref<128x128xf32, #tpu.memory_space<vmem>>, %arg3: memref<128x128xf32, #tpu.memory_space<vmem>>, %arg4: memref<1x128xf32, #tpu.memory_space<vmem>>, %arg5: memref<1x128xf32, #tpu.memory_space<vmem>>, %arg6: memref<128x128xf32, #tpu.memory_space<vmem>>) attributes {dimension_semantics = [#tpu.dimension_semantics<parallel>, #tpu.dimension_semantics<parallel>], iteration_bounds = array<i64: 1, 1>, scalar_prefetch = 0 : i64, scratch_operands = 0 : i64, tpu.core_type = #tpu.core_type<tc>, window_params = [{transform_indices = @transform_0, window_bounds = array<i64: 128, 128>}, {transform_indices = @transform_1, window_bounds = array<i64: 128, 128>}, {transform_indices = @transform_2, window_bounds = array<i64: 1, 128>}, {transform_indices = @transform_3, window_bounds = array<i64: 1, 128>}, {transform_indices = @transform_4, window_bounds = array<i64: 128, 128>}]} {
    %c0 = arith.constant 0 : index
    %c0_0 = arith.constant 0 : index
    %0 = vector.load %arg2[%c0, %c0_0] : memref<128x128xf32, #tpu.memory_space<vmem>>, vector<128x128xf32>
    %c0_1 = arith.constant 0 : index
    %c0_2 = arith.constant 0 : index
    %1 = vector.load %arg3[%c0_1, %c0_2] : memref<128x128xf32, #tpu.memory_space<vmem>>, vector<128x128xf32>
    %cst = arith.constant dense<0.000000e+00> : vector<128x128xf32>
    %2 = tpu.matmul %0, %1, %cst {dimension_numbers = #tpu.dot_dimension_numbers<[1], [1], [0], [0], [0, 0, 1, 0], [], []>} : vector<128x128xf32>, vector<128x128xf32>, vector<128x128xf32> -> vector<128x128xf32>
    %3 = arith.mulf %0, %0 : vector<128x128xf32>
    %cst_3 = arith.constant dense<0.000000e+00> : vector<128xf32>
    %4 = vector.multi_reduction <add>, %3, %cst_3 [1] : vector<128x128xf32> to vector<128xf32>
    %5 = vector.shape_cast %4 : vector<128xf32> to vector<128x1xf32>
    %cst_4 = arith.constant dense<0.000000e+00> : vector<128xf32>
    %6 = vector.multi_reduction <add>, %0, %cst_4 [1] : vector<128x128xf32> to vector<128xf32>
    %7 = vector.shape_cast %6 : vector<128xf32> to vector<128x1xf32>
    %cst_5 = arith.constant -2.000000e+00 : f32
    %8 = vector.broadcast %cst_5 : f32 to vector<128x128xf32>
    %9 = arith.mulf %8, %2 : vector<128x128xf32>
    %10 = vector.broadcast %5 : vector<128x1xf32> to vector<128x128xf32>
    %11 = arith.addf %9, %10 : vector<128x128xf32>
    %c0_6 = arith.constant 0 : index
    %c0_7 = arith.constant 0 : index
    %12 = vector.load %arg4[%c0_6, %c0_7] : memref<1x128xf32, #tpu.memory_space<vmem>>, vector<1x128xf32>
    %13 = vector.broadcast %12 : vector<1x128xf32> to vector<128x128xf32>
    %14 = arith.addf %11, %13 : vector<128x128xf32>
    %cst_8 = arith.constant 2.000000e-06 : f32
    %15 = vector.broadcast %cst_8 : f32 to vector<128x1xf32>
    %16 = arith.mulf %15, %7 : vector<128x1xf32>
    %17 = vector.broadcast %16 : vector<128x1xf32> to vector<128x128xf32>
    %18 = arith.addf %14, %17 : vector<128x128xf32>
    %c0_9 = arith.constant 0 : index
    %c0_10 = arith.constant 0 : index
    %19 = vector.load %arg5[%c0_9, %c0_10] : memref<1x128xf32, #tpu.memory_space<vmem>>, vector<1x128xf32>
    %cst_11 = arith.constant 2.000000e-06 : f32
    %20 = vector.broadcast %cst_11 : f32 to vector<1x128xf32>
    %21 = arith.mulf %20, %19 : vector<1x128xf32>
    %22 = vector.broadcast %21 : vector<1x128xf32> to vector<128x128xf32>
    %23 = arith.subf %18, %22 : vector<128x128xf32>
    %cst_12 = arith.constant 3.200000e-11 : f32
    %24 = vector.broadcast %cst_12 : f32 to vector<128x128xf32>
    %25 = arith.addf %23, %24 : vector<128x128xf32>
    %cst_13 = arith.constant 0.000000e+00 : f32
    %26 = vector.broadcast %cst_13 : f32 to vector<128x128xf32>
    %27 = arith.maximumf %25, %26 : vector<128x128xf32>
    %28 = math.sqrt %27 : vector<128x128xf32>
    %c0_14 = arith.constant 0 : index
    %c0_15 = arith.constant 0 : index
    %29 = vector.load %arg6[%c0_14, %c0_15] : memref<128x128xf32, #tpu.memory_space<vmem>>, vector<128x128xf32>
    tpu.vector_store %arg6[%c0_14, %c0_15], %28 {strides = array<i32>} : memref<128x128xf32, #tpu.memory_space<vmem>>, vector<128x128xf32>,
    return
  }
  func.func @transform_0(%arg0: i32, %arg1: i32) -> (i32, i32) {
    %c0_i32 = arith.constant 0 : i32
    %c0_i32_0 = arith.constant 0 : i32
    return %arg0, %c0_i32 : i32, i32
  }
  func.func @transform_1(%arg0: i32, %arg1: i32) -> (i32, i32) {
    %c0_i32 = arith.constant 0 : i32
    %c0_i32_0 = arith.constant 0 : i32
    return %arg1, %c0_i32 : i32, i32
  }
  func.func @transform_2(%arg0: i32, %arg1: i32) -> (i32, i32) {
    %c0_i32 = arith.constant 0 : i32
    %c0_i32_0 = arith.constant 0 : i32
    return %c0_i32, %arg1 : i32, i32
  }
  func.func @transform_3(%arg0: i32, %arg1: i32) -> (i32, i32) {
    %c0_i32 = arith.constant 0 : i32
    %c0_i32_0 = arith.constant 0 : i32
    return %c0_i32, %arg1 : i32, i32
  }
  func.func @transform_4(%arg0: i32, %arg1: i32) -> (i32, i32) {
    %c0_i32 = arith.constant 0 : i32
    return %arg0, %arg1 : i32, i32
  }
}

</mosaic_0001>

<llo_original>
// kernel: tpu_custom_call.1
$region0: #{tpu_custom_call.1}
  #allocation0 [shape = 'u32[]', space=smem, size = 0x4, offset = 0x4, fixed_abs, tag = 'smem constant byte address 0x4 - core index']
  #allocation1 [shape = 'u32[144,128]{1,0:T(1,128)}', space=vmem, size = 0x12000, scoped, tag = 'internal scratch']
  %s0 = inlined_call_operand.hbm [shape: f32[128,128], index: 0, kind: input, shape index: {}]
  %s1 = inlined_call_operand.hbm [shape: f32[128,128], index: 1, kind: input, shape index: {}]
  %s2 = inlined_call_operand.vmem [shape: f32[1,128], index: 2, kind: input, shape index: {}]
  %s3 = inlined_call_operand.vmem [shape: f32[1,128], index: 3, kind: input, shape index: {}]
  %s4 = inlined_call_operand.hbm [shape: f32[128,128], index: 4, kind: output, shape index: {}]
  %s5 = sld [smem:[#allocation0]]
  $region34: #{tpu_custom_call.1} parent=0
    _
  %s7 = ssub.s32 1, %s5
  %s8 = scalar_select 0, %s7, %s5
  $region1: #{tpu_custom_call.1} parent=0
    #allocation2 [shape = 'u8[65536]{0}', space=vmem, size = 0x10000, scoped, tag = 'input window, operand 0, single buffered']
    #allocation3 [shape = 's32[1]{0}', space=sflag, size = 0x4, scoped, tag = 'scoped memory for tpu_custom_call.1']
    #allocation4 [shape = 's32[1]{0}', space=sflag, size = 0x4, scoped, tag = 'scoped memory for tpu_custom_call.1']
    #allocation5 [shape = 'u8[65536]{0}', space=vmem, size = 0x10000, scoped, tag = 'input window, operand 1, single buffered']
    #allocation6 [shape = 's32[1]{0}', space=sflag, size = 0x4, scoped, tag = 'scoped memory for tpu_custom_call.1']
    #allocation7 [shape = 'u8[65536]{0}', space=vmem, size = 0x10000, scoped, tag = 'output window, operand 0, single buffered']
    %9 = vsyncpa [#allocation3], 0
    %10 = vsyncpa [#allocation6], 0
    %11 = vsyncpa [#allocation4], 0
    // Predicated region
    $region2: #{tpu_custom_call.1} parent=1 // pred_check
      _
    $region3: #{tpu_custom_call.1} parent=1 // pred_check_branch
      %13 = sbr.rel (0) target = $region5
    $region4: #{tpu_custom_call.1} parent=1 // pred_region
      %s15 = ssub.s32 2048, 2048
      %16 = vsyncadd [#allocation3], %s15
      %s17 = sshll.u32 [#allocation2], 4
      %s18 = int_to_ptr.vmem [resolvable:$true] %s17
      %23 = dma.hbm_to_vmem [thread:$0]  %s0, 2048, %s18, [#allocation3], 128, 128, 8
    $region5: #{tpu_custom_call.1} parent=1 // pred_fallthru
      _
    // Predicated region
    $region6: #{tpu_custom_call.1} parent=1 // pred_check
      _
    $region7: #{tpu_custom_call.1} parent=1 // pred_check_branch
      %25 = sbr.rel (0) target = $region9
    $region8: #{tpu_custom_call.1} parent=1 // pred_region
      %s27 = ssub.s32 2048, 2048
      %28 = vsyncadd [#allocation6], %s27
      %s29 = sshll.u32 [#allocation5], 4
      %s30 = int_to_ptr.vmem [resolvable:$true] %s29
      %35 = dma.hbm_to_vmem [thread:$0]  %s1, 2048, %s30, [#allocation6], 128, 128, 8
    $region9: #{tpu_custom_call.1} parent=1 // pred_fallthru
      _
    // Predicated region
    $region10: #{tpu_custom_call.1} parent=1 // pred_check
      _
    $region11: #{tpu_custom_call.1} parent=1 // pred_check_branch
      %37 = sbr.rel (0) target = $region13
    $region12: #{tpu_custom_call.1} parent=1 // pred_region
      _
    $region13: #{tpu_custom_call.1} parent=1 // pred_fallthru
      _
    // Predicated region
    $region14: #{tpu_custom_call.1} parent=1 // pred_check
      _
    $region15: #{tpu_custom_call.1} parent=1 // pred_check_branch
      %39 = sbr.rel (0) target = $region17
    $region16: #{tpu_custom_call.1} parent=1 // pred_region
      _
    $region17: #{tpu_custom_call.1} parent=1 // pred_fallthru
      _
    // Predicated region
    $region18: #{tpu_custom_call.1} parent=1 // pred_check
      _
    $region19: #{tpu_custom_call.1} parent=1 // pred_check_branch
      %41 = sbr.rel (0) target = $region21
    $region20: #{tpu_custom_call.1} parent=1 // pred_region
      %42 = dma.done [#allocation3], 2048
    $region21: #{tpu_custom_call.1} parent=1 // pred_fallthru
      _
    // Predicated region
    $region22: #{tpu_custom_call.1} parent=1 // pred_check
      _
    $region23: #{tpu_custom_call.1} parent=1 // pred_check_branch
      %44 = sbr.rel (0) target = $region25
    $region24: #{tpu_custom_call.1} parent=1 // pred_region
      %45 = dma.done [#allocation6], 2048
    $region25: #{tpu_custom_call.1} parent=1 // pred_fallthru
      _
    %v46 = vld [vmem:[#allocation2] sm:$0xff]
    %v47 = vld [vmem:[#allocation2 + $0x8] sm:$0xff]
    %v48 = vld [vmem:[#allocation2 + $0x10] sm:$0xff]
    %v49 = vld [vmem:[#allocation2 + $0x18] sm:$0xff]
    %v50 = vld [vmem:[#allocation2 + $0x20] sm:$0xff]
    %v51 = vld [vmem:[#allocation2 + $0x28] sm:$0xff]
    %v52 = vld [vmem:[#allocation2 + $0x30] sm:$0xff]
    %v53 = vld [vmem:[#allocation2 + $0x38] sm:$0xff]
    %v54 = vld [vmem:[#allocation2 + $0x40] sm:$0xff]
    %v55 = vld [vmem:[#allocation2 + $0x48] sm:$0xff]
    %v56 = vld [vmem:[#allocation2 + $0x50] sm:$0xff]
    %v57 = vld [vmem:[#allocation2 + $0x58] sm:$0xff]
    %v58 = vld [vmem:[#allocation2 + $0x60] sm:$0xff]
    %v59 = vld [vmem:[#allocation2 + $0x68] sm:$0xff]
    %v60 = vld [vmem:[#allocation2 + $0x70] sm:$0xff]
    %v61 = vld [vmem:[#allocation2 + $0x78] sm:$0xff]
    %v62 = vld [vmem:[#allocation5] sm:$0xff]
    %v63 = vld [vmem:[#allocation5 + $0x8] sm:$0xff]
    %v64 = vld [vmem:[#allocation5 + $0x10] sm:$0xff]
    %v65 = vld [vmem:[#allocation5 + $0x18] sm:$0xff]
    %v66 = vld [vmem:[#allocation5 + $0x20] sm:$0xff]
    %v67 = vld [vmem:[#allocation5 + $0x28] sm:$0xff]
    %v68 = vld [vmem:[#allocation5 + $0x30] sm:$0xff]
    %v69 = vld [vmem:[#allocation5 + $0x38] sm:$0xff]
    %v70 = vld [vmem:[#allocation5 + $0x40] sm:$0xff]
    %v71 = vld [vmem:[#allocation5 + $0x48] sm:$0xff]
    %v72 = vld [vmem:[#allocation5 + $0x50] sm:$0xff]
    %v73 = vld [vmem:[#allocation5 + $0x58] sm:$0xff]
    %v74 = vld [vmem:[#allocation5 + $0x60] sm:$0xff]
    %v75 = vld [vmem:[#allocation5 + $0x68] sm:$0xff]
    %v76 = vld [vmem:[#allocation5 + $0x70] sm:$0xff]
    %v77 = vld [vmem:[#allocation5 + $0x78] sm:$0xff]
    %78 = vmatprep.subr.mxu0 0.0
    %79 = vmatpush1.xpose.msra.mxu0 %v62
    %80 = vmatprep.subr.mxu0 0.0
    %81 = vmatpush1.xpose.msra.mxu0 %v63
    %82 = vmatprep.subr.mxu0 0.0
    %83 = vmatpush1.xpose.msra.mxu0 %v64
    %84 = vmatprep.subr.mxu0 0.0
    %85 = vmatpush1.xpose.msra.mxu0 %v65
    %86 = vmatprep.subr.mxu0 0.0
    %87 = vmatpush1.xpose.msra.mxu0 %v66
    %88 = vmatprep.subr.mxu0 0.0
    %89 = vmatpush1.xpose.msra.mxu0 %v67
    %90 = vmatprep.subr.mxu0 0.0
    %91 = vmatpush1.xpose.msra.mxu0 %v68
    %92 = vmatprep.subr.mxu0 0.0
    %93 = vmatpush1.xpose.msra.mxu0 %v69
    %94 = vmatprep.subr.mxu0 0.0
    %95 = vmatpush1.xpose.msra.mxu0 %v70
    %96 = vmatprep.subr.mxu0 0.0
    %97 = vmatpush1.xpose.msra.mxu0 %v71
    %98 = vmatprep.subr.mxu0 0.0
    %99 = vmatpush1.xpose.msra.mxu0 %v72
    %100 = vmatprep.subr.mxu0 0.0
    %101 = vmatpush1.xpose.msra.mxu0 %v73
    %102 = vmatprep.subr.mxu0 0.0
    %103 = vmatpush1.xpose.msra.mxu0 %v74
    %104 = vmatprep.subr.mxu0 0.0
    %105 = vmatpush1.xpose.msra.mxu0 %v75
    %106 = vmatprep.subr.mxu0 0.0
    %107 = vmatpush1.xpose.msra.mxu0 %v76
    %108 = vmatprep.subr.mxu0 0.0
    %109 = vmatpush1.xpose.msra.mxu0 %v77
    %110 = vmatprep.subr.mxu0 0.0
    %111 = vmatpush1.xpose.msra.mxu0 0.0
    %112 = vmatprep.subr.mxu0 0.0
    %113 = vmatpush1.xpose.msra.mxu0 0.0
    %114 = vmatprep.subr.mxu0 0.0
    %115 = vmatpush1.xpose.msra.mxu0 0.0
    %116 = vmatprep.subr.mxu0 0.0
    %117 = vmatpush1.xpose.msra.mxu0 0.0
    %118 = vmatprep.subr.mxu0 0.0
    %119 = vmatpush1.xpose.msra.mxu0 0.0
    %120 = vmatprep.subr.mxu0 0.0
    %121 = vmatpush1.xpose.msra.mxu0 0.0
    %122 = vmatprep.subr.mxu0 0.0
    %123 = vmatpush1.xpose.msra.mxu0 0.0
    %124 = vmatprep.subr.mxu0 0.0
    %125 = vmatpush1.xpose.msra.mxu0 0.0
    %126 = vmatprep.subr.mxu0 0.0
    %127 = vmatpush1.xpose.msra.mxu0 0.0
    %128 = vmatprep.subr.mxu0 0.0
    %129 = vmatpush1.xpose.msra.mxu0 0.0
    %130 = vmatprep.subr.mxu0 0.0
    %131 = vmatpush1.xpose.msra.mxu0 0.0
    %132 = vmatprep.subr.mxu0 0.0
    %133 = vmatpush1.xpose.msra.mxu0 0.0
    %134 = vmatprep.subr.mxu0 0.0
    %135 = vmatpush1.xpose.msra.mxu0 0.0
    %136 = vmatprep.subr.mxu0 0.0
    %137 = vmatpush1.xpose.msra.mxu0 0.0
    %138 = vmatprep.subr.mxu0 0.0
    %139 = vmatpush1.xpose.msra.mxu0 0.0
    %140 = vmatprep.subr.mxu0 0.0
    %141 = vmatpush1.xpose.msra.mxu0 0.0
    %142 = vmatprep.mubr.f32.mxu0 0.0
    %143 = vmatmul.mubr.f32.gmra.mrb[0].mxu0 %v46
    %v144 = vpop.f32.mrb[0].mxu0
    %v145 = vadd.f32 0.0, %v144
    %v146 = vpop.f32.mrb[0].mxu0
    %147 = vmatprep.mubr.f32.mxu0 0.0
    %148 = vmatmul.mubr.f32.gmra.mrb[0].mxu0 %v47
    %v149 = vpop.f32.mrb[0].mxu0
    %v150 = vadd.f32 0.0, %v149
    %v151 = vpop.f32.mrb[0].mxu0
    %152 = vmatprep.mubr.f32.mxu0 0.0
    %153 = vmatmul.mubr.f32.gmra.mrb[0].mxu0 %v48
    %v154 = vpop.f32.mrb[0].mxu0
    %v155 = vadd.f32 0.0, %v154
    %v156 = vpop.f32.mrb[0].mxu0
    %157 = vmatprep.mubr.f32.mxu0 0.0
    %158 = vmatmul.mubr.f32.gmra.mrb[0].mxu0 %v49
    %v159 = vpop.f32.mrb[0].mxu0
    %v160 = vadd.f32 0.0, %v159
    %v161 = vpop.f32.mrb[0].mxu0
    %162 = vmatprep.mubr.f32.mxu0 0.0
    %163 = vmatmul.mubr.f32.gmra.mrb[0].mxu0 %v50
    %v164 = vpop.f32.mrb[0].mxu0
    %v165 = vadd.f32 0.0, %v164
    %v166 = vpop.f32.mrb[0].mxu0
    %167 = vmatprep.mubr.f32.mxu0 0.0
    %168 = vmatmul.mubr.f32.gmra.mrb[0].mxu0 %v51
    %v169 = vpop.f32.mrb[0].mxu0
    %v170 = vadd.f32 0.0, %v169
    %v171 = vpop.f32.mrb[0].mxu0
    %172 = vmatprep.mubr.f32.mxu0 0.0
    %173 = vmatmul.mubr.f32.gmra.mrb[0].mxu0 %v52
    %v174 = vpop.f32.mrb[0].mxu0
    %v175 = vadd.f32 0.0, %v174
    %v176 = vpop.f32.mrb[0].mxu0
    %177 = vmatprep.mubr.f32.mxu0 0.0
    %178 = vmatmul.mubr.f32.gmra.mrb[0].mxu0 %v53
    %v179 = vpop.f32.mrb[0].mxu0
    %v180 = vadd.f32 0.0, %v179
    %v181 = vpop.f32.mrb[0].mxu0
    %182 = vmatprep.mubr.f32.mxu0 0.0
    %183 = vmatmul.mubr.f32.gmra.mrb[0].mxu0 %v54
    %v184 = vpop.f32.mrb[0].mxu0
    %v185 = vadd.f32 0.0, %v184
    %v186 = vpop.f32.mrb[0].mxu0
    %187 = vmatprep.mubr.f32.mxu0 0.0
    %188 = vmatmul.mubr.f32.gmra.mrb[0].mxu0 %v55
    %v189 = vpop.f32.mrb[0].mxu0
    %v190 = vadd.f32 0.0, %v189
    %v191 = vpop.f32.mrb[0].mxu0
    %192 = vmatprep.mubr.f32.mxu0 0.0
    %193 = vmatmul.mubr.f32.gmra.mrb[0].mxu0 %v56
    %v194 = vpop.f32.mrb[0].mxu0
    %v195 = vadd.f32 0.0, %v194
    %v196 = vpop.f32.mrb[0].mxu0
    %197 = vmatprep.mubr.f32.mxu0 0.0
    %198 = vmatmul.mubr.f32.gmra.mrb[0].mxu0 %v57
    %v199 = vpop.f32.mrb[0].mxu0
    %v200 = vadd.f32 0.0, %v199
    %v201 = vpop.f32.mrb[0].mxu0
    %202 = vmatprep.mubr.f32.mxu0 0.0
    %203 = vmatmul.mubr.f32.gmra.mrb[0].mxu0 %v58
    %v204 = vpop.f32.mrb[0].mxu0
    %v205 = vadd.f32 0.0, %v204
    %v206 = vpop.f32.mrb[0].mxu0
    %207 = vmatprep.mubr.f32.mxu0 0.0
    %208 = vmatmul.mubr.f32.gmra.mrb[0].mxu0 %v59
    %v209 = vpop.f32.mrb[0].mxu0
    %v210 = vadd.f32 0.0, %v209
    %v211 = vpop.f32.mrb[0].mxu0
    %212 = vmatprep.mubr.f32.mxu0 0.0
    %213 = vmatmul.mubr.f32.gmra.mrb[0].mxu0 %v60
    %v214 = vpop.f32.mrb[0].mxu0
    %v215 = vadd.f32 0.0, %v214
    %v216 = vpop.f32.mrb[0].mxu0
    %217 = vmatprep.mubr.f32.mxu0 0.0
    %218 = vmatmul.mubr.f32.gmra.mrb[0].mxu0 %v61
    %v219 = vpop.f32.mrb[0].mxu0
    %v220 = vadd.f32 0.0, %v219
    %v221 = vpop.f32.mrb[0].mxu0
    %222 = vdwg.mxu0
    %v223 = vmul.f32 %v46, %v46
    %v224 = vmul.f32 %v47, %v47
    %v225 = vmul.f32 %v48, %v48
    %v226 = vmul.f32 %v49, %v49
    %v227 = vmul.f32 %v50, %v50
    %v228 = vmul.f32 %v51, %v51
    %v229 = vmul.f32 %v52, %v52
    %v230 = vmul.f32 %v53, %v53
    %v231 = vmul.f32 %v54, %v54
    %v232 = vmul.f32 %v55, %v55
    %v233 = vmul.f32 %v56, %v56
    %v234 = vmul.f32 %v57, %v57
    %v235 = vmul.f32 %v58, %v58
    %v236 = vmul.f32 %v59, %v59
    %v237 = vmul.f32 %v60, %v60
    %v238 = vmul.f32 %v61, %v61
    %239 = vadd.xlane.f32.xlu0 %v223
    %v240 = vpop.xlane.xlu0 %239
    %241 = vadd.xlane.f32.xlu0 %v224
    %v242 = vpop.xlane.xlu0 %241
    %243 = vadd.xlane.f32.xlu0 %v225
    %v244 = vpop.xlane.xlu0 %243
    %245 = vadd.xlane.f32.xlu0 %v226
    %v246 = vpop.xlane.xlu0 %245
    %247 = vadd.xlane.f32.xlu0 %v227
    %v248 = vpop.xlane.xlu0 %247
    %249 = vadd.xlane.f32.xlu0 %v228
    %v250 = vpop.xlane.xlu0 %249
    %251 = vadd.xlane.f32.xlu0 %v229
    %v252 = vpop.xlane.xlu0 %251
    %253 = vadd.xlane.f32.xlu0 %v230
    %v254 = vpop.xlane.xlu0 %253
    %255 = vadd.xlane.f32.xlu0 %v231
    %v256 = vpop.xlane.xlu0 %255
    %257 = vadd.xlane.f32.xlu0 %v232
    %v258 = vpop.xlane.xlu0 %257
    %259 = vadd.xlane.f32.xlu0 %v233
    %v260 = vpop.xlane.xlu0 %259
    %261 = vadd.xlane.f32.xlu0 %v234
    %v262 = vpop.xlane.xlu0 %261
    %263 = vadd.xlane.f32.xlu0 %v235
    %v264 = vpop.xlane.xlu0 %263
    %265 = vadd.xlane.f32.xlu0 %v236
    %v266 = vpop.xlane.xlu0 %265
    %267 = vadd.xlane.f32.xlu0 %v237
    %v268 = vpop.xlane.xlu0 %267
    %269 = vadd.xlane.f32.xlu0 %v238
    %v270 = vpop.xlane.xlu0 %269
    %271 = vadd.xlane.f32.xlu0 %v46
    %v272 = vpop.xlane.xlu0 %271
    %273 = vadd.xlane.f32.xlu0 %v47
    %v274 = vpop.xlane.xlu0 %273
    %275 = vadd.xlane.f32.xlu0 %v48
    %v276 = vpop.xlane.xlu0 %275
    %277 = vadd.xlane.f32.xlu0 %v49
    %v278 = vpop.xlane.xlu0 %277
    %279 = vadd.xlane.f32.xlu0 %v50
    %v280 = vpop.xlane.xlu0 %279
    %281 = vadd.xlane.f32.xlu0 %v51
    %v282 = vpop.xlane.xlu0 %281
    %283 = vadd.xlane.f32.xlu0 %v52
    %v284 = vpop.xlane.xlu0 %283
    %285 = vadd.xlane.f32.xlu0 %v53
    %v286 = vpop.xlane.xlu0 %285
    %287 = vadd.xlane.f32.xlu0 %v54
    %v288 = vpop.xlane.xlu0 %287
    %289 = vadd.xlane.f32.xlu0 %v55
    %v290 = vpop.xlane.xlu0 %289
    %291 = vadd.xlane.f32.xlu0 %v56
    %v292 = vpop.xlane.xlu0 %291
    %293 = vadd.xlane.f32.xlu0 %v57
    %v294 = vpop.xlane.xlu0 %293
    %295 = vadd.xlane.f32.xlu0 %v58
    %v296 = vpop.xlane.xlu0 %295
    %297 = vadd.xlane.f32.xlu0 %v59
    %v298 = vpop.xlane.xlu0 %297
    %299 = vadd.xlane.f32.xlu0 %v60
    %v300 = vpop.xlane.xlu0 %299
    %301 = vadd.xlane.f32.xlu0 %v61
    %v302 = vpop.xlane.xlu0 %301
    %v303 = vmul.f32 %v145, -2.0
    %v304 = vmul.f32 %v150, -2.0
    %v305 = vmul.f32 %v155, -2.0
    %v306 = vmul.f32 %v160, -2.0
    %v307 = vmul.f32 %v165, -2.0
    %v308 = vmul.f32 %v170, -2.0
    %v309 = vmul.f32 %v175, -2.0
    %v310 = vmul.f32 %v180, -2.0
    %v311 = vmul.f32 %v185, -2.0
    %v312 = vmul.f32 %v190, -2.0
    %v313 = vmul.f32 %v195, -2.0
    %v314 = vmul.f32 %v200, -2.0
    %v315 = vmul.f32 %v205, -2.0
    %v316 = vmul.f32 %v210, -2.0
    %v317 = vmul.f32 %v215, -2.0
    %v318 = vmul.f32 %v220, -2.0
    %v319 = vadd.f32 %v303, %v240
    %v320 = vadd.f32 %v304, %v242
    %v321 = vadd.f32 %v305, %v244
    %v322 = vadd.f32 %v306, %v246
    %v323 = vadd.f32 %v307, %v248
    %v324 = vadd.f32 %v308, %v250
    %v325 = vadd.f32 %v309, %v252
    %v326 = vadd.f32 %v310, %v254
    %v327 = vadd.f32 %v311, %v256
    %v328 = vadd.f32 %v312, %v258
    %v329 = vadd.f32 %v313, %v260
    %v330 = vadd.f32 %v314, %v262
    %v331 = vadd.f32 %v315, %v264
    %v332 = vadd.f32 %v316, %v266
    %v333 = vadd.f32 %v317, %v268
    %v334 = vadd.f32 %v318, %v270
    %v335 = vld [vmem:[%s2] sm:$0x1]
    %v337 = vlaneseq
    %v338 = vshrl.u32 %v337, 7
    %v339 = vsub.s32 0, %v338
    %v340 = vrot.slane %v335, %v339
    %v342 = vadd.f32 %v319, %v340
    %v343 = vadd.f32 %v320, %v340
    %v344 = vadd.f32 %v321, %v340
    %v345 = vadd.f32 %v322, %v340
    %v346 = vadd.f32 %v323, %v340
    %v347 = vadd.f32 %v324, %v340
    %v348 = vadd.f32 %v325, %v340
    %v349 = vadd.f32 %v326, %v340
    %v350 = vadd.f32 %v327, %v340
    %v351 = vadd.f32 %v328, %v340
    %v352 = vadd.f32 %v329, %v340
    %v353 = vadd.f32 %v330, %v340
    %v354 = vadd.f32 %v331, %v340
    %v355 = vadd.f32 %v332, %v340
    %v356 = vadd.f32 %v333, %v340
    %v357 = vadd.f32 %v334, %v340
    %v358 = vmul.f32 %v272, 2e-06
    %v359 = vmul.f32 %v274, 2e-06
    %v360 = vmul.f32 %v276, 2e-06
    %v361 = vmul.f32 %v278, 2e-06
    %v362 = vmul.f32 %v280, 2e-06
    %v363 = vmul.f32 %v282, 2e-06
    %v364 = vmul.f32 %v284, 2e-06
    %v365 = vmul.f32 %v286, 2e-06
    %v366 = vmul.f32 %v288, 2e-06
    %v367 = vmul.f32 %v290, 2e-06
    %v368 = vmul.f32 %v292, 2e-06
    %v369 = vmul.f32 %v294, 2e-06
    %v370 = vmul.f32 %v296, 2e-06
    %v371 = vmul.f32 %v298, 2e-06
    %v372 = vmul.f32 %v300, 2e-06
    %v373 = vmul.f32 %v302, 2e-06
    %v374 = vadd.f32 %v342, %v358
    %v375 = vadd.f32 %v343, %v359
    %v376 = vadd.f32 %v344, %v360
    %v377 = vadd.f32 %v345, %v361
    %v378 = vadd.f32 %v346, %v362
    %v379 = vadd.f32 %v347, %v363
    %v380 = vadd.f32 %v348, %v364
    %v381 = vadd.f32 %v349, %v365
    %v382 = vadd.f32 %v350, %v366
    %v383 = vadd.f32 %v351, %v367
    %v384 = vadd.f32 %v352, %v368
    %v385 = vadd.f32 %v353, %v369
    %v386 = vadd.f32 %v354, %v370
    %v387 = vadd.f32 %v355, %v371
    %v388 = vadd.f32 %v356, %v372
    %v389 = vadd.f32 %v357, %v373
    %v390 = vld [vmem:[%s3] sm:$0x1]
    %v391 = vmul.f32 %v390, 2e-06
    %v393 = vlaneseq
    %v394 = vshrl.u32 %v393, 7
    %v395 = vsub.s32 0, %v394
    %v396 = vrot.slane %v391, %v395
    %v398 = vsub.f32 %v374, %v396
    %v399 = vsub.f32 %v375, %v396
    %v400 = vsub.f32 %v376, %v396
    %v401 = vsub.f32 %v377, %v396
    %v402 = vsub.f32 %v378, %v396
    %v403 = vsub.f32 %v379, %v396
    %v404 = vsub.f32 %v380, %v396
    %v405 = vsub.f32 %v381, %v396
    %v406 = vsub.f32 %v382, %v396
    %v407 = vsub.f32 %v383, %v396
    %v408 = vsub.f32 %v384, %v396
    %v409 = vsub.f32 %v385, %v396
    %v410 = vsub.f32 %v386, %v396
    %v411 = vsub.f32 %v387, %v396
    %v412 = vsub.f32 %v388, %v396
    %v413 = vsub.f32 %v389, %v396
    %v414 = vadd.f32 %v398, 3.2e-11
    %v415 = vadd.f32 %v399, 3.2e-11
    %v416 = vadd.f32 %v400, 3.2e-11
    %v417 = vadd.f32 %v401, 3.2e-11
    %v418 = vadd.f32 %v402, 3.2e-11
    %v419 = vadd.f32 %v403, 3.2e-11
    %v420 = vadd.f32 %v404, 3.2e-11
    %v421 = vadd.f32 %v405, 3.2e-11
    %v422 = vadd.f32 %v406, 3.2e-11
    %v423 = vadd.f32 %v407, 3.2e-11
    %v424 = vadd.f32 %v408, 3.2e-11
    %v425 = vadd.f32 %v409, 3.2e-11
    %v426 = vadd.f32 %v410, 3.2e-11
    %v427 = vadd.f32 %v411, 3.2e-11
    %v428 = vadd.f32 %v412, 3.2e-11
    %v429 = vadd.f32 %v413, 3.2e-11
    %v430 = vmax.f32 %v414, 0.0
    %v431 = vmax.f32 %v415, 0.0
    %v432 = vmax.f32 %v416, 0.0
    %v433 = vmax.f32 %v417, 0.0
    %v434 = vmax.f32 %v418, 0.0
    %v435 = vmax.f32 %v419, 0.0
    %v436 = vmax.f32 %v420, 0.0
    %v437 = vmax.f32 %v421, 0.0
    %v438 = vmax.f32 %v422, 0.0
    %v439 = vmax.f32 %v423, 0.0
    %v440 = vmax.f32 %v424, 0.0
    %v441 = vmax.f32 %v425, 0.0
    %v442 = vmax.f32 %v426, 0.0
    %v443 = vmax.f32 %v427, 0.0
    %v444 = vmax.f32 %v428, 0.0
    %v445 = vmax.f32 %v429, 0.0
    %v446 = vrsqrt.pop %v430
    %v447 = vmul.f32 %v430, %v446
    %vm448 = vcmp.eq.f32.partialorder %v430, inf
    %v449 = vsel %vm448, %v430, %v447
    %vm450 = vcmp.eq.f32.partialorder %v430, 0.0
    %v451 = vand.u32 %v430, 2147483648
    %v452 = vsel %vm450, %v451, %v449
    %v453 = vrsqrt.pop %v431
    %v454 = vmul.f32 %v431, %v453
    %vm455 = vcmp.eq.f32.partialorder %v431, inf
    %v456 = vsel %vm455, %v431, %v454
    %vm457 = vcmp.eq.f32.partialorder %v431, 0.0
    %v458 = vand.u32 %v431, 2147483648
    %v459 = vsel %vm457, %v458, %v456
    %v460 = vrsqrt.pop %v432
    %v461 = vmul.f32 %v432, %v460
    %vm462 = vcmp.eq.f32.partialorder %v432, inf
    %v463 = vsel %vm462, %v432, %v461
    %vm464 = vcmp.eq.f32.partialorder %v432, 0.0
    %v465 = vand.u32 %v432, 2147483648
    %v466 = vsel %vm464, %v465, %v463
    %v467 = vrsqrt.pop %v433
    %v468 = vmul.f32 %v433, %v467
    %vm469 = vcmp.eq.f32.partialorder %v433, inf
    %v470 = vsel %vm469, %v433, %v468
    %vm471 = vcmp.eq.f32.partialorder %v433, 0.0
    %v472 = vand.u32 %v433, 2147483648
    %v473 = vsel %vm471, %v472, %v470
    %v474 = vrsqrt.pop %v434
    %v475 = vmul.f32 %v434, %v474
    %vm476 = vcmp.eq.f32.partialorder %v434, inf
    %v477 = vsel %vm476, %v434, %v475
    %vm478 = vcmp.eq.f32.partialorder %v434, 0.0
    %v479 = vand.u32 %v434, 2147483648
    %v480 = vsel %vm478, %v479, %v477
    %v481 = vrsqrt.pop %v435
    %v482 = vmul.f32 %v435, %v481
    %vm483 = vcmp.eq.f32.partialorder %v435, inf
    %v484 = vsel %vm483, %v435, %v482
    %vm485 = vcmp.eq.f32.partialorder %v435, 0.0
    %v486 = vand.u32 %v435, 2147483648
    %v487 = vsel %vm485, %v486, %v484
    %v488 = vrsqrt.pop %v436
    %v489 = vmul.f32 %v436, %v488
    %vm490 = vcmp.eq.f32.partialorder %v436, inf
    %v491 = vsel %vm490, %v436, %v489
    %vm492 = vcmp.eq.f32.partialorder %v436, 0.0
    %v493 = vand.u32 %v436, 2147483648
    %v494 = vsel %vm492, %v493, %v491
    %v495 = vrsqrt.pop %v437
    %v496 = vmul.f32 %v437, %v495
    %vm497 = vcmp.eq.f32.partialorder %v437, inf
    %v498 = vsel %vm497, %v437, %v496
    %vm499 = vcmp.eq.f32.partialorder %v437, 0.0
    %v500 = vand.u32 %v437, 2147483648
    %v501 = vsel %vm499, %v500, %v498
    %v502 = vrsqrt.pop %v438
    %v503 = vmul.f32 %v438, %v502
    %vm504 = vcmp.eq.f32.partialorder %v438, inf
    %v505 = vsel %vm504, %v438, %v503
    %vm506 = vcmp.eq.f32.partialorder %v438, 0.0
    %v507 = vand.u32 %v438, 2147483648
    %v508 = vsel %vm506, %v507, %v505
    %v509 = vrsqrt.pop %v439
    %v510 = vmul.f32 %v439, %v509
    %vm511 = vcmp.eq.f32.partialorder %v439, inf
    %v512 = vsel %vm511, %v439, %v510
    %vm513 = vcmp.eq.f32.partialorder %v439, 0.0
    %v514 = vand.u32 %v439, 2147483648
    %v515 = vsel %vm513, %v514, %v512
    %v516 = vrsqrt.pop %v440
    %v517 = vmul.f32 %v440, %v516
    %vm518 = vcmp.eq.f32.partialorder %v440, inf
    %v519 = vsel %vm518, %v440, %v517
    %vm520 = vcmp.eq.f32.partialorder %v440, 0.0
    %v521 = vand.u32 %v440, 2147483648
    %v522 = vsel %vm520, %v521, %v519
    %v523 = vrsqrt.pop %v441
    %v524 = vmul.f32 %v441, %v523
    %vm525 = vcmp.eq.f32.partialorder %v441, inf
    %v526 = vsel %vm525, %v441, %v524
    %vm527 = vcmp.eq.f32.partialorder %v441, 0.0
    %v528 = vand.u32 %v441, 2147483648
    %v529 = vsel %vm527, %v528, %v526
    %v530 = vrsqrt.pop %v442
    %v531 = vmul.f32 %v442, %v530
    %vm532 = vcmp.eq.f32.partialorder %v442, inf
    %v533 = vsel %vm532, %v442, %v531
    %vm534 = vcmp.eq.f32.partialorder %v442, 0.0
    %v535 = vand.u32 %v442, 2147483648
    %v536 = vsel %vm534, %v535, %v533
    %v537 = vrsqrt.pop %v443
    %v538 = vmul.f32 %v443, %v537
    %vm539 = vcmp.eq.f32.partialorder %v443, inf
    %v540 = vsel %vm539, %v443, %v538
    %vm541 = vcmp.eq.f32.partialorder %v443, 0.0
    %v542 = vand.u32 %v443, 2147483648
    %v543 = vsel %vm541, %v542, %v540
    %v544 = vrsqrt.pop %v444
    %v545 = vmul.f32 %v444, %v544
    %vm546 = vcmp.eq.f32.partialorder %v444, inf
    %v547 = vsel %vm546, %v444, %v545
    %vm548 = vcmp.eq.f32.partialorder %v444, 0.0
    %v549 = vand.u32 %v444, 2147483648
    %v550 = vsel %vm548, %v549, %v547
    %v551 = vrsqrt.pop %v445
    %v552 = vmul.f32 %v445, %v551
    %vm553 = vcmp.eq.f32.partialorder %v445, inf
    %v554 = vsel %vm553, %v445, %v552
    %vm555 = vcmp.eq.f32.partialorder %v445, 0.0
    %v556 = vand.u32 %v445, 2147483648
    %v557 = vsel %vm555, %v556, %v554
    %558 = vst [vmem:[#allocation7] sm:$0xff] %v452
    %559 = vst [vmem:[#allocation7 + $0x8] sm:$0xff] %v459
    %560 = vst [vmem:[#allocation7 + $0x10] sm:$0xff] %v466
    %561 = vst [vmem:[#allocation7 + $0x18] sm:$0xff] %v473
    %562 = vst [vmem:[#allocation7 + $0x20] sm:$0xff] %v480
    %563 = vst [vmem:[#allocation7 + $0x28] sm:$0xff] %v487
    %564 = vst [vmem:[#allocation7 + $0x30] sm:$0xff] %v494
    %565 = vst [vmem:[#allocation7 + $0x38] sm:$0xff] %v501
    %566 = vst [vmem:[#allocation7 + $0x40] sm:$0xff] %v508
    %567 = vst [vmem:[#allocation7 + $0x48] sm:$0xff] %v515
    %568 = vst [vmem:[#allocation7 + $0x50] sm:$0xff] %v522
    %569 = vst [vmem:[#allocation7 + $0x58] sm:$0xff] %v529
    %570 = vst [vmem:[#allocation7 + $0x60] sm:$0xff] %v536
    %571 = vst [vmem:[#allocation7 + $0x68] sm:$0xff] %v543
    %572 = vst [vmem:[#allocation7 + $0x70] sm:$0xff] %v550
    %573 = vst [vmem:[#allocation7 + $0x78] sm:$0xff] %v557
    // Predicated region
    $region26: #{tpu_custom_call.1} parent=1 // pred_check
      _
    $region27: #{tpu_custom_call.1} parent=1 // pred_check_branch
      %575 = sbr.rel (0) target = $region29
    $region28: #{tpu_custom_call.1} parent=1 // pred_region
      %s577 = ssub.s32 2048, 2048
      %578 = vsyncadd [#allocation4], %s577
      %s579 = sshll.u32 [#allocation7], 4
      %s580 = int_to_ptr.vmem [resolvable:$true] %s579
      %585 = dma.vmem_to_hbm [thread:$0]  %s580, 2048, %s4, [#allocation4], 128, 128, 8
    $region29: #{tpu_custom_call.1} parent=1 // pred_fallthru
      _
    // Predicated region
    $region30: #{tpu_custom_call.1} parent=1 // pred_check
      _
    $region31: #{tpu_custom_call.1} parent=1 // pred_check_branch
      %587 = sbr.rel (0) target = $region33
    $region32: #{tpu_custom_call.1} parent=1 // pred_region
      %588 = dma.done [#allocation4], 2048
    $region33: #{tpu_custom_call.1} parent=1 // pred_fallthru
      _
    %589 = vsyncpa [#allocation3], 1
    %590 = vsyncpa [#allocation6], 1
    %591 = vsyncpa [#allocation4], 1

</llo_original>
